<compile_context>
chip_gen: v7x
topology: tpu7x:2x2x1
jax: 0.10.0
libtpu: 0.0.40
codegen_flags: <defaults>
</compile_context>

<pallas_src>
import functools

import jax
import jax.numpy as jnp
from jax.experimental import pallas as pl
from jax.experimental.pallas import tpu as pltpu


def _lr_kernel(ids_ref, row_ref, w_ref, b_ref, out_ref, acc_ref, *, inv_len):
    """One grid step = one token: gathered row -> max_norm scale -> project -> accumulate."""
    li = pl.program_id(1)

    @pl.when(li == 0)
    def _init():
        acc_ref[...] = jnp.zeros_like(acc_ref)

    row = row_ref[...]                                            # (1, E) f32 gathered row

    # nn.Embedding(max_norm=1.0): rows with ||row|| > 1 are scaled by 1/(||row|| + 1e-7).
    sumsq = jnp.sum(row * row, axis=-1, keepdims=True)            # (1, 1)
    norm = jnp.sqrt(sumsq)
    scale = jnp.where(norm > 1.0, 1.0 / (norm + 1e-7), 1.0)       # keep PyTorch eps placement

    # Projection before pooling: E->1 on VPU + XLU (broadcast mul + lane reduce), no MXU.
    score = jnp.sum(row * w_ref[...], axis=-1, keepdims=True) * scale   # (1, 1)
    acc_ref[...] += score

    @pl.when(li == pl.num_programs(1) - 1)
    def _finalize():
        pooled = acc_ref[...] * inv_len                           # AvgPool1d over sentence
        out_ref[...] = jax.nn.sigmoid(pooled + b_ref[...])        # Linear bias + Sigmoid


def lr_forward(idx, embed_table, w, b):
    """idx: (B, L) int token ids; embed_table: (V, E); w: (1, E); b: (1,). Returns (B, 1) f32."""
    B, L = idx.shape
    V, E = embed_table.shape

    ids = idx.astype(jnp.int32)                                   # scalar-prefetch -> SMEM
    table3 = embed_table.astype(jnp.float32).reshape(V, 1, E)     # row-gather friendly layout
    w_row = w.reshape(1, E).astype(jnp.float32)
    b11 = b.reshape(1, 1).astype(jnp.float32)

    kernel = functools.partial(_lr_kernel, inv_len=1.0 / float(L))

    grid_spec = pltpu.PrefetchScalarGridSpec(
        num_scalar_prefetch=1,                 # token ids land in SMEM, feed the index_maps
        grid=(B, L),                           # batch (parallel) x sentence (reduction, last)
        in_specs=[
            # Data-dependent row gather: DMA only embedding row ids[b, l] for this step.
            pl.BlockSpec((None, 1, E), lambda bi, li, tok: (tok[bi, li], 0, 0)),
            # Linear weight row and bias stay resident in VMEM (block index constant).
            pl.BlockSpec((1, E), lambda bi, li, tok: (0, 0)),
            pl.BlockSpec((1, 1), lambda bi, li, tok: (0, 0)),
        ],
        out_specs=pl.BlockSpec((None, 1, 1), lambda bi, li, tok: (bi, 0, 0)),
        scratch_shapes=[pltpu.VMEM((1, 1), jnp.float32)],         # running sum of token scores
    )

    out = pl.pallas_call(
        kernel,
        out_shape=jax.ShapeDtypeStruct((B, 1, 1), jnp.float32),
        grid_spec=grid_spec,
        compiler_params=pltpu.CompilerParams(
            dimension_semantics=("parallel", "arbitrary"),
            vmem_limit_bytes=32 * 1024 * 1024,
        ),
        cost_estimate=pl.CostEstimate(
            flops=B * L * (5 * E + 6),
            transcendentals=B * L + B,
            bytes_accessed=B * L * (E * 4 + 4) + E * 4 + 4 + B * 4,
        ),
    )(ids, table3, w_row, b11)

    return out.reshape(B, 1)


def lr_reference(idx, embed_table, w, b):
    """Pure-JAX reference of the PyTorch forward (for a correctness spot-check)."""
    emb = embed_table[idx]                                        # (B, L, E)
    norm = jnp.sqrt(jnp.sum(emb * emb, axis=-1, keepdims=True))
    emb = emb * jnp.where(norm > 1.0, 1.0 / (norm + 1e-7), 1.0)
    pooled = jnp.mean(emb, axis=1)                                # (B, E)
    return jax.nn.sigmoid(pooled @ w.T + b.reshape(1, 1))         # (B, 1)


if __name__ == "__main__":
    # batch, sentence_lens, vocab_lens, embed_size
    B, L, V, E = 8, 8, 32, 32

    key = jax.random.PRNGKey(0)
    k_tab, k_w, k_b, k_idx = jax.random.split(key, 4)

    # Deterministic synthetic parameters (shapes from LR.__init__).
    embed_table = jax.random.normal(k_tab, (V, E), jnp.float32)          # nn.Embedding(V, E)
    bound = 1.0 / (E ** 0.5)
    w = jax.random.uniform(k_w, (1, E), jnp.float32, -bound, bound)      # nn.Linear(E, 1).weight
    b = jax.random.uniform(k_b, (1,), jnp.float32, -bound, bound)        # nn.Linear(E, 1).bias

    idx = jax.random.randint(k_idx, (B, L), 0, V, jnp.int32)

    out = jax.block_until_ready(lr_forward(idx, embed_table, w, b))
    assert out.shape == (B, 1) and out.dtype == jnp.float32

    ref = lr_reference(idx, embed_table, w, b)
    assert bool(jnp.allclose(out, ref, atol=1e-5, rtol=1e-5)), (out, ref)

    print("KERNEL_OK")
</pallas_src>

<mosaic_0001>
module attributes {stable_mosaic.version = 11 : i64} {
  func.func @_lr_kernel(%arg0: i32, %arg1: i32, %arg2: memref<8x8xi32, #tpu.memory_space<smem>>, %arg3: memref<1x1x32xf32, #tpu.memory_space<vmem>>, %arg4: memref<1x32xf32, #tpu.memory_space<vmem>>, %arg5: memref<1x1xf32, #tpu.memory_space<vmem>>, %arg6: memref<1x1x1xf32, #tpu.memory_space<vmem>>, %arg7: memref<1x1xf32, #tpu.memory_space<vmem>>) attributes {dimension_semantics = [#tpu.dimension_semantics<parallel>, #tpu.dimension_semantics<arbitrary>], iteration_bounds = array<i64: 8, 8>, scalar_prefetch = 1 : i64, scratch_operands = 1 : i64, tpu.core_type = #tpu.core_type<tc>, window_params = [{transform_indices = @transform_0, window_bounds = array<i64: 1, 1, 32>}, {pipeline_mode = #tpu.pipeline_mode<synchronous>, transform_indices = @transform_1, window_bounds = array<i64: 1, 32>}, {pipeline_mode = #tpu.pipeline_mode<synchronous>, transform_indices = @transform_2, window_bounds = array<i64: 1, 1>}, {transform_indices = @transform_3, window_bounds = array<i64: 1, 1, 1>}]} {
    %c0_i32 = arith.constant 0 : i32
    %0 = arith.cmpi eq, %arg1, %c0_i32 : i32
    %1 = arith.extui %0 : i1 to i32
    %c0_i32_0 = arith.constant 0 : i32
    %2 = arith.cmpi ne, %1, %c0_i32_0 : i32
    scf.if %2 {
      %cst_15 = arith.constant 0.000000e+00 : f32
      %28 = vector.broadcast %cst_15 : f32 to vector<1x1xf32>
      %c0_16 = arith.constant 0 : index
      %c0_17 = arith.constant 0 : index
      %29 = vector.load %arg7[%c0_16, %c0_17] : memref<1x1xf32, #tpu.memory_space<vmem>>, vector<1x1xf32>
      tpu.vector_store %arg7[%c0_16, %c0_17], %28 {strides = array<i32>} : memref<1x1xf32, #tpu.memory_space<vmem>>, vector<1x1xf32>,
    } else {
    }
    %c0 = arith.constant 0 : index
    %c0_1 = arith.constant 0 : index
    %c0_2 = arith.constant 0 : index
    %3 = vector.load %arg3[%c0, %c0_1, %c0_2] : memref<1x1x32xf32, #tpu.memory_space<vmem>>, vector<1x1x32xf32>
    %4 = vector.shape_cast %3 : vector<1x1x32xf32> to vector<1x32xf32>
    %5 = arith.mulf %4, %4 : vector<1x32xf32>
    %cst = arith.constant dense<0.000000e+00> : vector<1xf32>
    %6 = vector.multi_reduction <add>, %5, %cst [1] : vector<1x32xf32> to vector<1xf32>
    %7 = vector.shape_cast %6 : vector<1xf32> to vector<1x1xf32>
    %8 = math.sqrt %7 : vector<1x1xf32>
    %cst_3 = arith.constant 1.000000e+00 : f32
    %9 = vector.broadcast %cst_3 : f32 to vector<1x1xf32>
    %10 = arith.cmpf ogt, %8, %9 : vector<1x1xf32>
    %cst_4 = arith.constant 1.000000e-07 : f32
    %11 = vector.broadcast %cst_4 : f32 to vector<1x1xf32>
    %12 = arith.addf %8, %11 : vector<1x1xf32>
    %cst_5 = arith.constant 1.000000e+00 : f32
    %13 = vector.broadcast %cst_5 : f32 to vector<1x1xf32>
    %14 = arith.divf %13, %12 : vector<1x1xf32>
    %cst_6 = arith.constant 1.000000e+00 : f32
    %15 = vector.broadcast %cst_6 : f32 to vector<1x1xf32>
    %16 = arith.select %10, %14, %15 : vector<1x1xi1>, vector<1x1xf32>
    %c0_7 = arith.constant 0 : index
    %c0_8 = arith.constant 0 : index
    %17 = vector.load %arg4[%c0_7, %c0_8] : memref<1x32xf32, #tpu.memory_space<vmem>>, vector<1x32xf32>
    %18 = arith.mulf %4, %17 : vector<1x32xf32>
    %cst_9 = arith.constant dense<0.000000e+00> : vector<1xf32>
    %19 = vector.multi_reduction <add>, %18, %cst_9 [1] : vector<1x32xf32> to vector<1xf32>
    %20 = vector.shape_cast %19 : vector<1xf32> to vector<1x1xf32>
    %21 = arith.mulf %20, %16 : vector<1x1xf32>
    %c0_10 = arith.constant 0 : index
    %c0_11 = arith.constant 0 : index
    %22 = vector.load %arg7[%c0_10, %c0_11] : memref<1x1xf32, #tpu.memory_space<vmem>>, vector<1x1xf32>
    %23 = arith.addf %22, %21 : vector<1x1xf32>
    %c0_12 = arith.constant 0 : index
    %c0_13 = arith.constant 0 : index
    %24 = vector.load %arg7[%c0_12, %c0_13] : memref<1x1xf32, #tpu.memory_space<vmem>>, vector<1x1xf32>
    tpu.vector_store %arg7[%c0_12, %c0_13], %23 {strides = array<i32>} : memref<1x1xf32, #tpu.memory_space<vmem>>, vector<1x1xf32>,
    %c7_i32 = arith.constant 7 : i32
    %25 = arith.cmpi eq, %arg1, %c7_i32 : i32
    %26 = arith.extui %25 : i1 to i32
    %c0_i32_14 = arith.constant 0 : i32
    %27 = arith.cmpi ne, %26, %c0_i32_14 : i32
    scf.if %27 {
      %c0_15 = arith.constant 0 : index
      %c0_16 = arith.constant 0 : index
      %28 = vector.load %arg7[%c0_15, %c0_16] : memref<1x1xf32, #tpu.memory_space<vmem>>, vector<1x1xf32>
      %cst_17 = arith.constant 1.250000e-01 : f32
      %29 = vector.broadcast %cst_17 : f32 to vector<1x1xf32>
      %30 = arith.mulf %28, %29 : vector<1x1xf32>
      %c0_18 = arith.constant 0 : index
      %c0_19 = arith.constant 0 : index
      %31 = vector.load %arg5[%c0_18, %c0_19] : memref<1x1xf32, #tpu.memory_space<vmem>>, vector<1x1xf32>
      %32 = arith.addf %30, %31 : vector<1x1xf32>
      %33 = arith.negf %32 : vector<1x1xf32>
      %34 = math.exp %33 : vector<1x1xf32>
      %cst_20 = arith.constant 1.000000e+00 : f32
      %35 = vector.broadcast %cst_20 : f32 to vector<1x1xf32>
      %36 = arith.addf %35, %34 : vector<1x1xf32>
      %37 = arith.divf %35, %36 : vector<1x1xf32>
      %c0_21 = arith.constant 0 : index
      %c0_22 = arith.constant 0 : index
      %c0_23 = arith.constant 0 : index
      %38 = vector.load %arg6[%c0_21, %c0_22, %c0_23] : memref<1x1x1xf32, #tpu.memory_space<vmem>>, vector<1x1x1xf32>
      %39 = vector.shape_cast %38 : vector<1x1x1xf32> to vector<1x1xf32>
      %40 = vector.shape_cast %37 : vector<1x1xf32> to vector<1x1x1xf32>
      tpu.vector_store %arg6[%c0_21, %c0_22, %c0_23], %40 {strides = array<i32>} : memref<1x1x1xf32, #tpu.memory_space<vmem>>, vector<1x1x1xf32>,
    } else {
    }
    return
  }
  func.func @transform_0(%arg0: i32, %arg1: i32, %arg2: memref<8x8xi32, #tpu.memory_space<smem>>) -> (i32, i32, i32) {
    %0 = arith.index_cast %arg0 : i32 to index
    %1 = arith.index_cast %arg1 : i32 to index
    %2 = memref.load %arg2[%0, %1] : memref<8x8xi32, #tpu.memory_space<smem>>
    %c0_i32 = arith.constant 0 : i32
    %c0_i32_0 = arith.constant 0 : i32
    %c0_i32_1 = arith.constant 0 : i32
    return %2, %c0_i32, %c0_i32_0 : i32, i32, i32
  }
  func.func @transform_1(%arg0: i32, %arg1: i32, %arg2: memref<8x8xi32, #tpu.memory_space<smem>>) -> (i32, i32) {
    %c0_i32 = arith.constant 0 : i32
    %c0_i32_0 = arith.constant 0 : i32
    %c0_i32_1 = arith.constant 0 : i32
    return %c0_i32, %c0_i32_0 : i32, i32
  }
  func.func @transform_2(%arg0: i32, %arg1: i32, %arg2: memref<8x8xi32, #tpu.memory_space<smem>>) -> (i32, i32) {
    %c0_i32 = arith.constant 0 : i32
    %c0_i32_0 = arith.constant 0 : i32
    %c0_i32_1 = arith.constant 0 : i32
    return %c0_i32, %c0_i32_0 : i32, i32
  }
  func.func @transform_3(%arg0: i32, %arg1: i32, %arg2: memref<8x8xi32, #tpu.memory_space<smem>>) -> (i32, i32, i32) {
    %c0_i32 = arith.constant 0 : i32
    %c0_i32_0 = arith.constant 0 : i32
    %c0_i32_1 = arith.constant 0 : i32
    return %arg0, %c0_i32, %c0_i32_0 : i32, i32, i32
  }
}

</mosaic_0001>

<llo_original>
// kernel: tpu_custom_call.1
$region0: #{tpu_custom_call.1}
  #allocation0 [shape = 'u32[]', space=smem, size = 0x4, offset = 0x4, fixed_abs, tag = 'smem constant byte address 0x4 - core index']
  #allocation1 [shape = 'u32[144,128]{1,0:T(1,128)}', space=vmem, size = 0x12000, scoped, tag = 'internal scratch']
  #allocation2 [shape = 'f32[1,1]{1,0:T(1,128)}', space=vmem, size = 0x200, scoped, tag = 'scratch operand']
  #allocation3 [shape = 's32[1]{0}', space=sflag, size = 0x4, scoped, tag = 'scoped memory for tpu_custom_call.1']
  #allocation4 [shape = 'u8[4096]{0}', space=smem, size = 0x1000, scoped, tag = 'prefetched SMEM operand 0']
  #allocation5 [shape = 'f32[1,1]{1,0:T(1,128)S(1)}', space=vmem, size = 0x200, scoped, tag = 'scoped memory for tpu_custom_call.1']
  %s0 = inlined_call_operand.hbm [shape: s32[8,8], index: 0, kind: input, shape index: {}]
  %s1 = inlined_call_operand.hbm [shape: f32[32,1,32], index: 1, kind: input, shape index: {}]
  %s2 = inlined_call_operand.vmem [shape: f32[1,32], index: 2, kind: input, shape index: {}]
  %s3 = inlined_call_operand.<no memory space> [shape: f32[1,1], index: 3, kind: input, shape index: {}]
  %s4 = inlined_call_operand.vmem [shape: f32[8,1,1], index: 4, kind: output, shape index: {}]
  %s5 = sld [smem:[#allocation0]]
  $region57: #{tpu_custom_call.1} parent=0
    _
  %s7 = ssub.s32 1, %s5
  %s8 = scalar_select 0, %s7, %s5
  %10 = dma.hbm_to_smem %s0, 128, [#allocation4], [#allocation3]
  %v11 = vstv %s3
  %12 = vst [vmem:[#allocation5] sm:$0x1] %v11
  %13 = dma.done [#allocation3], 128
  %14 = sfence
  $region1: #{tpu_custom_call.1} parent=0
    #allocation6 [shape = 'u8[1024]{0}', space=vmem, size = 0x400, scoped, tag = 'input window, operand 1']
    #allocation7 [shape = 's32[2]{0}', space=sflag, size = 0x8, scoped, tag = 'scoped memory for tpu_custom_call.1']
    %15 = vsyncpa [#allocation7], 0
    %s16 = scalar_lea.sflag [#allocation7], 1
    %17 = vsyncpa %s16, 0
    loop: start=0, step=1, limit=66
    $region2: #{tpu_custom_call.1} parent=1 // loop_pre_header
      _
    $region3: #{tpu_custom_call.1} parent=1 // loop_header
      %s19 = sphi 0, %s23
      %p20 = scmp.ge.s32.totalorder %s19, 66
      %s26 = sphi 0, %s38
      %s27 = sphi 0, %s34
      %s28 = sphi 0, %s26
      %s29 = sphi 0, %s27
      %s30 = sphi 0, %s28
      %s31 = sphi 0, %s29
      %s57 = sphi 0, %s59
      %s60 = sphi 0, %s57
      %s61 = sphi 0, %s60
      %s77 = sphi 0, %s61
      %s81 = sphi 0, %s81
      %s83 = sphi 0, %s81
      %s84 = sphi 0, %s83
      %s98 = sphi 0, %s84
      %s102 = sphi 0, %s102
      %s104 = sphi 0, %s102
      %s105 = sphi 0, %s104
      %s119 = sphi 0, %s105
      %s125 = sphi 0, %s127
      %s128 = sphi 0, %s125
      %s129 = sphi 0, %s128
      %s145 = sphi 0, %s129
    $region4: #{tpu_custom_call.1} parent=1 // loop_header_branch
      %22 = sbr.rel (%p20) target = $region8
    $region5: #{tpu_custom_call.1} parent=1 // loop_body
      %s24 = ssub.s32 %s19, 1
      %s25 = ssub.s32 %s19, 2
      %s32 = sadd.s32 1, %s27
      %p33 = scmp.ge.s32.totalorder %s32, 8
      %s34 = scalar_select %p33, 0, %s32
      %s35 = sadd.s32 1, %s26
      %s36 = scalar_select %p33, %s35, %s26
      %p37 = scmp.ge.s32.totalorder %s36, 8
      %s38 = scalar_select %p37, 0, %s36
      %s39 = sshra.s32 %s27, 7
      %s40 = sand.u32 %s27, 127
      %s41 = sadd.s32 %s39, %s26
      %s42 = smul.u32 %s41, 128
      %s43 = sshra.s32 %s27, 7
      %s44 = sand.u32 %s27, 127
      %s45 = sadd.s32 %s42, %s44
      %s46 = sld [smem:[#allocation4 + %s45]]
      %s47 = sshra.s32 %s34, 7
      %s48 = sand.u32 %s34, 127
      %s49 = sadd.s32 %s47, %s38
      %s50 = smul.u32 %s49, 128
      %s51 = sshra.s32 %s34, 7
      %s52 = sand.u32 %s34, 127
      %s53 = sadd.s32 %s50, %s52
      %s54 = sld [smem:[#allocation4 + %s53]]
      %s55 = ssub.s32 %s46, %s54
      %p56 = scmp.eq.s32.totalorder %s55, 0
      %s58 = sadd.s32 %s57, 1
      %s59 = scalar_select %p56, %s57, %s58
      %p62 = pneg %p56
      %p63 = scmp.eq.s32.totalorder %s19, 63
      %p64 = por %p62, %p63
      %p65 = scmp.ne.s32.totalorder %s57, %s60
      %p66 = scmp.eq.s32.totalorder %s19, 0
      %p67 = por %p65, %p66
      %p68 = scmp.ne.s32.totalorder %s57, %s60
      %p69 = scmp.eq.s32.totalorder %s24, 63
      %p70 = por %p68, %p69
      %p71 = scmp.ne.s32.totalorder %s60, %s61
      %p72 = scmp.eq.s32.totalorder %s24, 0
      %p73 = por %p71, %p72
      %p74 = scmp.ne.s32.totalorder %s60, %s61
      %p75 = scmp.eq.s32.totalorder %s25, 63
      %p76 = por %p74, %p75
      %p78 = scmp.ne.s32.totalorder %s61, %s77
      %p79 = scmp.eq.s32.totalorder %s25, 0
      %p80 = por %p78, %p79
      %s82 = sadd.s32 %s81, 1
      %p85 = scmp.eq.s32.totalorder %s19, 63
      %p86 = scmp.ne.s32.totalorder %s81, %s83
      %p87 = scmp.eq.s32.totalorder %s19, 0
      %p88 = por %p86, %p87
      %p89 = scmp.ne.s32.totalorder %s81, %s83
      %p90 = scmp.eq.s32.totalorder %s24, 63
      %p91 = por %p89, %p90
      %p92 = scmp.ne.s32.totalorder %s83, %s84
      %p93 = scmp.eq.s32.totalorder %s24, 0
      %p94 = por %p92, %p93
      %p95 = scmp.ne.s32.totalorder %s83, %s84
      %p96 = scmp.eq.s32.totalorder %s25, 63
      %p97 = por %p95, %p96
      %p99 = scmp.ne.s32.totalorder %s84, %s98
      %p100 = scmp.eq.s32.totalorder %s25, 0
      %p101 = por %p99, %p100
      %s103 = sadd.s32 %s102, 1
      %p106 = scmp.eq.s32.totalorder %s19, 63
      %p107 = scmp.ne.s32.totalorder %s102, %s104
      %p108 = scmp.eq.s32.totalorder %s19, 0
      %p109 = por %p107, %p108
      %p110 = scmp.ne.s32.totalorder %s102, %s104
      %p111 = scmp.eq.s32.totalorder %s24, 63
      %p112 = por %p110, %p111
      %p113 = scmp.ne.s32.totalorder %s104, %s105
      %p114 = scmp.eq.s32.totalorder %s24, 0
      %p115 = por %p113, %p114
      %p116 = scmp.ne.s32.totalorder %s104, %s105
      %p117 = scmp.eq.s32.totalorder %s25, 63
      %p118 = por %p116, %p117
      %p120 = scmp.ne.s32.totalorder %s105, %s119
      %p121 = scmp.eq.s32.totalorder %s25, 0
      %p122 = por %p120, %p121
      %s123 = ssub.s32 %s26, %s38
      %p124 = scmp.eq.s32.totalorder %s123, 0
      %s126 = sadd.s32 %s125, 1
      %s127 = scalar_select %p124, %s125, %s126
      %p130 = pneg %p124
      %p131 = scmp.eq.s32.totalorder %s19, 63
      %p132 = por %p130, %p131
      %p133 = scmp.ne.s32.totalorder %s125, %s128
      %p134 = scmp.eq.s32.totalorder %s19, 0
      %p135 = por %p133, %p134
      %p136 = scmp.ne.s32.totalorder %s125, %s128
      %p137 = scmp.eq.s32.totalorder %s24, 63
      %p138 = por %p136, %p137
      %p139 = scmp.ne.s32.totalorder %s128, %s129
      %p140 = scmp.eq.s32.totalorder %s24, 0
      %p141 = por %p139, %p140
      %p142 = scmp.ne.s32.totalorder %s128, %s129
      %p143 = scmp.eq.s32.totalorder %s25, 63
      %p144 = por %p142, %p143
      %p146 = scmp.ne.s32.totalorder %s129, %s145
      %p147 = scmp.eq.s32.totalorder %s25, 0
      %p148 = por %p146, %p147
      %p149 = scmp.le.s32.totalorder 1, %s19
      %p150 = scmp.lt.s32.totalorder %s19, 65
      %p151 = pnand %p149, %p150
      %p152 = pneg %p151
      // Predicated region
      $region9: #{tpu_custom_call.1} parent=5 // pred_check
        _
      $region10: #{tpu_custom_call.1} parent=5 // pred_check_branch
        %154 = sbr.rel (%p151) target = $region12
      $region11: #{tpu_custom_call.1} parent=5 // pred_region
        %s155 = ssub.s32 %s19, 1
        // Predicated region
        $region13: #{tpu_custom_call.1} parent=11 // pred_check
          %p156 = pneg %p94
        $region14: #{tpu_custom_call.1} parent=11 // pred_check_branch
          %158 = sbr.rel (%p156) target = $region16
        $region15: #{tpu_custom_call.1} parent=11 // pred_region
          _
        $region16: #{tpu_custom_call.1} parent=11 // pred_fallthru
          _
        // Predicated region
        $region17: #{tpu_custom_call.1} parent=11 // pred_check
          %p159 = pneg %p115
        $region18: #{tpu_custom_call.1} parent=11 // pred_check_branch
          %161 = sbr.rel (%p159) target = $region20
        $region19: #{tpu_custom_call.1} parent=11 // pred_region
          _
        $region20: #{tpu_custom_call.1} parent=11 // pred_fallthru
          _
      $region12: #{tpu_custom_call.1} parent=5 // pred_fallthru
        _
      %p162 = scmp.lt.s32.totalorder %s19, 64
      // Predicated region
      $region21: #{tpu_custom_call.1} parent=5 // pred_check
        %p163 = pneg %p162
      $region22: #{tpu_custom_call.1} parent=5 // pred_check_branch
        %165 = sbr.rel (%p163) target = $region24
      $region23: #{tpu_custom_call.1} parent=5 // pred_region
        // Predicated region
        $region25: #{tpu_custom_call.1} parent=23 // pred_check
          %p166 = pneg %p67
        $region26: #{tpu_custom_call.1} parent=23 // pred_check_branch
          %168 = sbr.rel (%p166) target = $region28
        $region27: #{tpu_custom_call.1} parent=23 // pred_region
          %s169 = sand.u32 %s57, 1
          %s170 = scalar_lea.sflag [#allocation7], %s169
          %s171 = sand.u32 %s57, 1
          %s172 = scalar_lea.vmem [#allocation6], %s171
          %s173 = sshra.s32 %s27, 7
          %s174 = sand.u32 %s27, 127
          %s175 = sadd.s32 %s173, %s26
          %s176 = smul.u32 %s175, 128
          %s177 = sshra.s32 %s27, 7
          %s178 = sand.u32 %s27, 127
          %s179 = sadd.s32 %s176, %s178
          %s180 = sld [smem:[#allocation4 + %s179]]
          %s182 = ssub.s32 16, 16
          %183 = vsyncadd %s170, %s182
          %s184 = smul.addr %s180, 16
          %s185 = scalar_lea.hbm %s1, %s184
          %s187 = sshll.u32 %s172, 4
          %s188 = int_to_ptr.vmem [resolvable:$true] %s187
          %190 = dma.hbm_to_vmem [thread:$0]  %s185, 16, %s188, %s170
        $region28: #{tpu_custom_call.1} parent=23 // pred_fallthru
          _
      $region24: #{tpu_custom_call.1} parent=5 // pred_fallthru
        _
      %p191 = scmp.le.s32.totalorder 1, %s19
      %p192 = scmp.lt.s32.totalorder %s19, 65
      %p193 = pnand %p191, %p192
      %p194 = pneg %p193
      // Predicated region
      $region29: #{tpu_custom_call.1} parent=5 // pred_check
        _
      $region30: #{tpu_custom_call.1} parent=5 // pred_check_branch
        %196 = sbr.rel (%p193) target = $region32
      $region31: #{tpu_custom_call.1} parent=5 // pred_region
        %s197 = ssub.s32 %s19, 1
        %s198 = sand.u32 %s60, 1
        %s199 = scalar_lea.sflag [#allocation7], %s198
        %s200 = sand.u32 %s60, 1
        %s201 = scalar_lea.vmem [#allocation6], %s200
        // Predicated region
        $region33: #{tpu_custom_call.1} parent=31 // pred_check
          %p202 = pneg %p73
        $region34: #{tpu_custom_call.1} parent=31 // pred_check_branch
          %204 = sbr.rel (%p202) target = $region36
        $region35: #{tpu_custom_call.1} parent=31 // pred_region
          %205 = dma.done %s199, 16
        $region36: #{tpu_custom_call.1} parent=31 // pred_fallthru
          _
        %s206 = sand.u32 %s60, 1
        %s207 = scalar_lea.sflag [#allocation7], %s206
        %s208 = sand.u32 %s60, 1
        %s209 = scalar_lea.vmem [#allocation6], %s208
        %p210 = pneg %p73
        %p211 = pneg %p70
        %p212 = pneg %p94
        %p213 = pneg %p91
        %p214 = pneg %p115
        %p215 = pneg %p112
        %p216 = pneg %p141
        %p217 = pneg %p138
        %p218 = scmp.lt.s32.totalorder %s28, 7
        %s219 = scalar_select %p218, %s28, 7
        %s220 = scalar_lea.vmem %s4, %s219
        %s221 = sshra.s32 %s29, 7
        %s222 = sand.u32 %s29, 127
        %s223 = sadd.s32 %s221, %s28
        %s224 = smul.u32 %s223, 128
        %s225 = sshra.s32 %s29, 7
        %s226 = sand.u32 %s29, 127
        %s227 = sadd.s32 %s224, %s226
        %s228 = sld [smem:[#allocation4 + %s227]]
        %p229 = scmp.lt.s32.totalorder %s28, 7
        %s230 = scalar_select %p229, %s28, 7
        %s231 = scalar_lea.vmem %s4, %s230
        %p232 = scmp.eq.s32.totalorder %s29, 0
        // Predicated region
        $region37: #{tpu_custom_call.1} parent=31 // pred_check
          %p233 = pneg %p232
        $region38: #{tpu_custom_call.1} parent=31 // pred_check_branch
          %235 = sbr.rel (%p233) target = $region40
        $region39: #{tpu_custom_call.1} parent=31 // pred_region
          %vm236 = vcmask 0
          %237 = vst.msk [vmem:[#allocation2] sm:$0x1] %vm236, 0.0
        $region40: #{tpu_custom_call.1} parent=31 // pred_fallthru
          _
        %v238 = vld [vmem:[%s201] sm:$0x1]
        %v239 = vmul.f32 %v238, %v238
        %vm240 = vcmask 253952
        %v241 = vsel %vm240, %v239, 0.0
        %242 = vadd.xlane.f32.xlu0 %v241
        %v243 = vpop.xlane.xlu0 %242
        %v244 = vrsqrt.pop %v243
        %v245 = vmul.f32 %v243, %v244
        %vm246 = vcmp.eq.f32.partialorder %v243, inf
        %v247 = vsel %vm246, %v243, %v245
        %vm248 = vcmp.eq.f32.partialorder %v243, 0.0
        %v249 = vand.u32 %v243, 2147483648
        %v250 = vsel %vm248, %v249, %v247
        %vm251 = vcmp.gt.f32.partialorder %v250, 1.0
        %v252 = vadd.f32 %v250, 1e-07
        %v253 = vrcp.pop %v252
        %v254 = vmul.f32 1.0, %v253
        %v255 = vsel %vm251, %v254, 1.0
        %v256 = vld [vmem:[%s2] sm:$0x1]
        %v257 = vmul.f32 %v238, %v256
        %v258 = vsel %vm240, %v257, 0.0
        %259 = vadd.xlane.f32.xlu0 %v258
        %v260 = vpop.xlane.xlu0 %259
        %v261 = vmul.f32 %v260, %v255
        %v262 = vld [vmem:[#allocation2] sm:$0x1]
        %v263 = vadd.f32 %v262, %v261
        %vm264 = vcmask 0
        %265 = vst.msk [vmem:[#allocation2] sm:$0x1] %vm264, %v263
        %p266 = scmp.eq.s32.totalorder %s29, 7
        // Predicated region
        $region41: #{tpu_custom_call.1} parent=31 // pred_check
          %p267 = pneg %p266
        $region42: #{tpu_custom_call.1} parent=31 // pred_check_branch
          %269 = sbr.rel (%p267) target = $region44
        $region43: #{tpu_custom_call.1} parent=31 // pred_region
          %v270 = vld [vmem:[#allocation2] sm:$0x1]
          %v271 = vmul.f32 %v270, 0.125
          %v272 = vld [vmem:[#allocation5] sm:$0x1]
          %v273 = vadd.f32 %v271, %v272
          %v274 = vxor.u32 %v273, 2147483648
          %v275 = vmul.f32 %v274, 1.442695
          %v276 = vpow.pop %v275
          %v277 = vadd.f32 %v276, 1.0
          %v278 = vrcp.pop %v277
          %v279 = vmul.f32 1.0, %v278
          %280 = vst.msk [vmem:[%s231] sm:$0x1] %vm264, %v279
        $region44: #{tpu_custom_call.1} parent=31 // pred_fallthru
          _
        %p281 = scmp.lt.s32.totalorder %s28, 7
        %s282 = scalar_select %p281, %s28, 7
        %s283 = scalar_lea.vmem %s4, %s282
        // Predicated region
        $region45: #{tpu_custom_call.1} parent=31 // pred_check
          %p284 = pneg %p138
        $region46: #{tpu_custom_call.1} parent=31 // pred_check_branch
          %286 = sbr.rel (%p284) target = $region48
        $region47: #{tpu_custom_call.1} parent=31 // pred_region
          _
        $region48: #{tpu_custom_call.1} parent=31 // pred_fallthru
          _
      $region32: #{tpu_custom_call.1} parent=5 // pred_fallthru
        _
      %p287 = scmp.le.s32.totalorder 2, %s19
      // Predicated region
      $region49: #{tpu_custom_call.1} parent=5 // pred_check
        %p288 = pneg %p287
      $region50: #{tpu_custom_call.1} parent=5 // pred_check_branch
        %290 = sbr.rel (%p288) target = $region52
      $region51: #{tpu_custom_call.1} parent=5 // pred_region
        %s291 = ssub.s32 %s19, 2
        // Predicated region
        $region53: #{tpu_custom_call.1} parent=51 // pred_check
          %p292 = pneg %p144
        $region54: #{tpu_custom_call.1} parent=51 // pred_check_branch
          %294 = sbr.rel (%p292) target = $region56
        $region55: #{tpu_custom_call.1} parent=51 // pred_region
          %p295 = scmp.lt.s32.totalorder %s30, 7
          %s296 = scalar_select %p295, %s30, 7
          %s297 = scalar_lea.vmem %s4, %s296
        $region56: #{tpu_custom_call.1} parent=51 // pred_fallthru
          _
      $region52: #{tpu_custom_call.1} parent=5 // pred_fallthru
        _
    $region6: #{tpu_custom_call.1} parent=1 // loop_footer
      %s23 = sadd.s32 1, %s19
    $region7: #{tpu_custom_call.1} parent=1 // loop_footer_branch
      %18 = sbr.rel target = $region3
    $region8: #{tpu_custom_call.1} parent=1 // loop_exit
      _
    %298 = vsyncpa [#allocation7], 1
    %s299 = scalar_lea.sflag [#allocation7], 1
    %300 = vsyncpa %s299, 1

</llo_original>
